<compile_context>
chip_gen: v7x
topology: tpu7x:2x2x1
jax: 0.10.0
libtpu: 0.0.40
codegen_flags: <defaults>
</compile_context>

<pallas_src>
import jax
import jax.numpy as jnp
from jax.experimental import pallas as pl
from jax.experimental.pallas import tpu as pltpu

# Model hyper-parameters (from the PyTorch module)
H = 60
M = 100
N = 6
CTX = N - 1              # 5 context positions
SIZE = 32                # vocab size ("size" ctor arg) — small synthetic choice
BATCH = 2


def _round_up(v, mult):
    return (v + mult - 1) // mult * mult


# Padded (lane/sublane aligned) dims used inside the kernel.
KIN = CTX * SIZE                    # 160  (flattened x feature dim)
KIN_P = _round_up(KIN, 128)         # 256  (clean (8,128)-tiled LHS / weight K dim)
H_P = _round_up(H, 128)             # 128
SIZE_P = _round_up(SIZE, 128)       # 128  (logit / output lanes)
TB_MAX = 128                        # max batch rows per grid step


# ---------------------------------------------------------------------------
# Fused kernel: (folded fc1+fc2) + tanh -> fc3 + (folded fc1+fc4) -> softmax
# ---------------------------------------------------------------------------
def nplm_kernel(x_ref, w12_ref, b2_ref, w3_ref, b3_ref, w14_ref, o_ref):
    x = x_ref[...]                                                        # (TB, KIN_P)
    # y = tanh(fc2(fc1(x)))   (fc1 folded into W12 at staging)
    y = jnp.tanh(
        jnp.dot(x, w12_ref[...], preferred_element_type=jnp.float32) + b2_ref[...]
    )                                                                     # (TB, H_P)
    # z = fc3(y) + fc4(fc1(x))   (fc1 folded into W14; vocab-pad mask baked into b3)
    z = (
        jnp.dot(y, w3_ref[...], preferred_element_type=jnp.float32)
        + b3_ref[...]
        + jnp.dot(x, w14_ref[...], preferred_element_type=jnp.float32)
    )                                                                     # (TB, SIZE_P)
    # Numerically stable softmax over last axis (padded lanes hold -1e30 -> exp == 0).
    z = z - jnp.max(z, axis=-1, keepdims=True)
    e = jnp.exp(z)
    s = jnp.sum(e, axis=-1, keepdims=True)
    r = pl.reciprocal(s, approx=True)     # EUP slot (otherwise idle)
    r = r * (2.0 - s * r)                 # one Newton step -> full f32 accuracy
    o_ref[...] = e * r


# ---------------------------------------------------------------------------
# Wrapper
# ---------------------------------------------------------------------------
def nplm_forward(x, packed):
    """x: (B, CTX, SIZE) float32 -> (B, SIZE) float32 softmax probabilities."""
    w12_p, b2_p, w3_p, b3_p, w14_p = packed
    B = x.shape[0]

    # Batch tile: up to 128 rows/step (fills the MXU, amortizes grid-step overhead);
    # for tiny batches shrink the tile to avoid computing many padded rows.
    TB = min(TB_MAX, _round_up(B, 8))
    B_P = _round_up(B, TB)

    # Flatten context into features; single pad op adds feature lanes (160->256)
    # and, only if ragged, the remainder batch rows.
    x_flat = x.reshape(B, KIN)
    x_pad = jnp.pad(x_flat, ((0, B_P - B), (0, KIN_P - KIN)))

    grid = (B_P // TB,)

    def resident(shape):
        # Constant block index -> weights stay VMEM-resident across grid steps.
        return pl.BlockSpec(shape, lambda i: (0,) * len(shape))

    flops = 2 * B_P * (KIN_P * H_P + H_P * SIZE_P + KIN_P * SIZE_P)
    transcendentals = B_P * (H_P + SIZE_P + 1)            # tanh + exp + rcp
    bytes_accessed = 4 * (
        B_P * KIN_P + KIN_P * H_P + H_P
        + H_P * SIZE_P + SIZE_P + KIN_P * SIZE_P + B_P * SIZE_P
    )

    out_p = pl.pallas_call(
        nplm_kernel,
        out_shape=jax.ShapeDtypeStruct((B_P, SIZE_P), jnp.float32),
        grid=grid,
        in_specs=[
            pl.BlockSpec((TB, KIN_P), lambda i: (i, 0)),  # x: tiled over batch
            resident((KIN_P, H_P)),                       # W12 = W1_blk @ W2
            resident((1, H_P)),                           # b2
            resident((H_P, SIZE_P)),                      # W3
            resident((1, SIZE_P)),                        # b3 (+ baked -1e30 vocab mask)
            resident((KIN_P, SIZE_P)),                    # W14 = W1_blk @ W4
        ],
        out_specs=pl.BlockSpec((TB, SIZE_P), lambda i: (i, 0)),
        compiler_params=pltpu.CompilerParams(dimension_semantics=("parallel",)),
        cost_estimate=pl.CostEstimate(
            flops=flops,
            transcendentals=transcendentals,
            bytes_accessed=bytes_accessed,
        ),
    )(x_pad, w12_p, b2_p, w3_p, b3_p, w14_p)

    # Drop batch and vocab padding.
    return out_p[:B, :SIZE]


# ---------------------------------------------------------------------------
# Parameter init (PyTorch nn.Linear default) + one-time padded weight staging
# ---------------------------------------------------------------------------
def init_params(key):
    k1, k2, k2b, k3, k3b, k4 = jax.random.split(key, 6)

    def uni(k, shape, fan_in):
        bound = 1.0 / jnp.sqrt(jnp.float32(fan_in))
        return jax.random.uniform(k, shape, jnp.float32, -bound, bound)

    w1 = uni(k1, (SIZE, M), SIZE)             # fc1 (no bias), stored (in, out)
    w2 = uni(k2, (CTX * M, H), CTX * M)       # fc2
    b2 = uni(k2b, (1, H), CTX * M)
    w3 = uni(k3, (H, SIZE), H)                # fc3
    b3 = uni(k3b, (1, SIZE), H)
    w4 = uni(k4, (CTX * M, SIZE), CTX * M)    # fc4 (no bias)
    return (w1, w2, b2, w3, b3, w4)


def prepare_params(params):
    """One-time staging: fold fc1 into fc2/fc4, pad lane dims to 128, bake vocab mask."""
    w1, w2, b2, w3, b3, w4 = params
    F = CTX * M                                           # 500

    # Block-diagonal fc1 weight (exact per-position fc1), only used here at staging.
    w1_blk = jnp.zeros((KIN, F), jnp.float32)
    for c in range(CTX):
        w1_blk = w1_blk.at[c * SIZE:(c + 1) * SIZE, c * M:(c + 1) * M].set(w1)

    # Fold fc1 into the downstream layers: (x @ W1_blk) @ W = x @ (W1_blk @ W).
    w12 = w1_blk @ w2                                     # (KIN, H)
    w14 = w1_blk @ w4                                     # (KIN, SIZE)

    # Zero-pad to lane/K-aligned shapes (padded rows/cols contribute exact zeros).
    w12_p = jnp.zeros((KIN_P, H_P), jnp.float32).at[:KIN, :H].set(w12)
    b2_p = jnp.zeros((1, H_P), jnp.float32).at[:, :H].set(b2)
    w3_p = jnp.zeros((H_P, SIZE_P), jnp.float32).at[:H, :SIZE].set(w3)
    # Bake the vocab-padding mask into b3: padded logit lanes become -1e30 -> exp == 0.
    b3_p = jnp.full((1, SIZE_P), -1e30, jnp.float32).at[:, :SIZE].set(b3)
    w14_p = jnp.zeros((KIN_P, SIZE_P), jnp.float32).at[:KIN, :SIZE].set(w14)
    return (w12_p, b2_p, w3_p, b3_p, w14_p)


if __name__ == "__main__":
    key = jax.random.PRNGKey(0)
    kx, kp = jax.random.split(key)

    x = jax.random.normal(kx, (BATCH, CTX, SIZE), jnp.float32)
    params = init_params(kp)
    packed = prepare_params(params)       # staged once, reused every forward call

    out = jax.jit(nplm_forward)(x, packed)
    out = jax.block_until_ready(out)

    assert out.shape == (BATCH, SIZE)
    assert bool(jnp.all(jnp.isfinite(out)))
    # softmax rows must sum to 1
    assert jnp.allclose(jnp.sum(out, axis=-1), 1.0, atol=1e-4)

    # pure-JAX reference of the PyTorch forward (original unpadded, unfolded weights)
    w1, w2, b2, w3, b3, w4 = params
    f_ref = (x.reshape(BATCH * CTX, SIZE) @ w1).reshape(BATCH, CTX * M)
    y_ref = jnp.tanh(f_ref @ w2 + b2)
    z_ref = y_ref @ w3 + b3 + f_ref @ w4
    ref = jax.nn.softmax(z_ref, axis=1)
    assert jnp.allclose(out, ref, atol=1e-4), "mismatch vs JAX reference"

    print("KERNEL_OK")
</pallas_src>

<mosaic_0001>
module attributes {stable_mosaic.version = 11 : i64} {
  func.func @nplm_kernel(%arg0: i32, %arg1: memref<8x256xf32, #tpu.memory_space<vmem>>, %arg2: memref<256x128xf32, #tpu.memory_space<vmem>>, %arg3: memref<1x128xf32, #tpu.memory_space<vmem>>, %arg4: memref<128x128xf32, #tpu.memory_space<vmem>>, %arg5: memref<1x128xf32, #tpu.memory_space<vmem>>, %arg6: memref<256x128xf32, #tpu.memory_space<vmem>>, %arg7: memref<8x128xf32, #tpu.memory_space<vmem>>) attributes {dimension_semantics = [#tpu.dimension_semantics<parallel>], iteration_bounds = array<i64: 1>, scalar_prefetch = 0 : i64, scratch_operands = 0 : i64, tpu.core_type = #tpu.core_type<tc>, window_params = [{transform_indices = @transform_0, window_bounds = array<i64: 8, 256>}, {pipeline_mode = #tpu.pipeline_mode<synchronous>, transform_indices = @transform_1, window_bounds = array<i64: 256, 128>}, {pipeline_mode = #tpu.pipeline_mode<synchronous>, transform_indices = @transform_2, window_bounds = array<i64: 1, 128>}, {pipeline_mode = #tpu.pipeline_mode<synchronous>, transform_indices = @transform_3, window_bounds = array<i64: 128, 128>}, {pipeline_mode = #tpu.pipeline_mode<synchronous>, transform_indices = @transform_4, window_bounds = array<i64: 1, 128>}, {pipeline_mode = #tpu.pipeline_mode<synchronous>, transform_indices = @transform_5, window_bounds = array<i64: 256, 128>}, {transform_indices = @transform_6, window_bounds = array<i64: 8, 128>}]} {
    %c0 = arith.constant 0 : index
    %c0_0 = arith.constant 0 : index
    %0 = vector.load %arg1[%c0, %c0_0] : memref<8x256xf32, #tpu.memory_space<vmem>>, vector<8x256xf32>
    %c0_1 = arith.constant 0 : index
    %c0_2 = arith.constant 0 : index
    %1 = vector.load %arg2[%c0_1, %c0_2] : memref<256x128xf32, #tpu.memory_space<vmem>>, vector<256x128xf32>
    %cst = arith.constant dense<0.000000e+00> : vector<8x128xf32>
    %2 = tpu.matmul %0, %1, %cst {dimension_numbers = #tpu.dot_dimension_numbers<[1], [0], [0], [1], [0, 0, 1, 1], [], []>} : vector<8x256xf32>, vector<256x128xf32>, vector<8x128xf32> -> vector<8x128xf32>
    %c0_3 = arith.constant 0 : index
    %c0_4 = arith.constant 0 : index
    %3 = vector.load %arg3[%c0_3, %c0_4] : memref<1x128xf32, #tpu.memory_space<vmem>>, vector<1x128xf32>
    %4 = vector.broadcast %3 : vector<1x128xf32> to vector<8x128xf32>
    %5 = arith.addf %2, %4 : vector<8x128xf32>
    %6 = math.tanh %5 : vector<8x128xf32>
    %c0_5 = arith.constant 0 : index
    %c0_6 = arith.constant 0 : index
    %7 = vector.load %arg4[%c0_5, %c0_6] : memref<128x128xf32, #tpu.memory_space<vmem>>, vector<128x128xf32>
    %cst_7 = arith.constant dense<0.000000e+00> : vector<8x128xf32>
    %8 = tpu.matmul %6, %7, %cst_7 {dimension_numbers = #tpu.dot_dimension_numbers<[1], [0], [0], [1], [0, 0, 1, 1], [], []>} : vector<8x128xf32>, vector<128x128xf32>, vector<8x128xf32> -> vector<8x128xf32>
    %c0_8 = arith.constant 0 : index
    %c0_9 = arith.constant 0 : index
    %9 = vector.load %arg5[%c0_8, %c0_9] : memref<1x128xf32, #tpu.memory_space<vmem>>, vector<1x128xf32>
    %10 = vector.broadcast %9 : vector<1x128xf32> to vector<8x128xf32>
    %11 = arith.addf %8, %10 : vector<8x128xf32>
    %c0_10 = arith.constant 0 : index
    %c0_11 = arith.constant 0 : index
    %12 = vector.load %arg6[%c0_10, %c0_11] : memref<256x128xf32, #tpu.memory_space<vmem>>, vector<256x128xf32>
    %cst_12 = arith.constant dense<0.000000e+00> : vector<8x128xf32>
    %13 = tpu.matmul %0, %12, %cst_12 {dimension_numbers = #tpu.dot_dimension_numbers<[1], [0], [0], [1], [0, 0, 1, 1], [], []>} : vector<8x256xf32>, vector<256x128xf32>, vector<8x128xf32> -> vector<8x128xf32>
    %14 = arith.addf %11, %13 : vector<8x128xf32>
    %cst_13 = arith.constant dense<0xFF800000> : vector<8xf32>
    %15 = vector.multi_reduction <maximumf>, %14, %cst_13 [1] : vector<8x128xf32> to vector<8xf32>
    %16 = vector.shape_cast %15 : vector<8xf32> to vector<8x1xf32>
    %17 = vector.broadcast %16 : vector<8x1xf32> to vector<8x128xf32>
    %18 = arith.subf %14, %17 : vector<8x128xf32>
    %19 = math.exp %18 : vector<8x128xf32>
    %cst_14 = arith.constant dense<0.000000e+00> : vector<8xf32>
    %20 = vector.multi_reduction <add>, %19, %cst_14 [1] : vector<8x128xf32> to vector<8xf32>
    %21 = vector.shape_cast %20 : vector<8xf32> to vector<8x1xf32>
    %22 = tpu.reciprocal %21 {approx = true} : vector<8x1xf32> -> vector<8x1xf32>
    %23 = arith.mulf %21, %22 : vector<8x1xf32>
    %cst_15 = arith.constant 2.000000e+00 : f32
    %24 = vector.broadcast %cst_15 : f32 to vector<8x1xf32>
    %25 = arith.subf %24, %23 : vector<8x1xf32>
    %26 = arith.mulf %22, %25 : vector<8x1xf32>
    %27 = vector.broadcast %26 : vector<8x1xf32> to vector<8x128xf32>
    %28 = arith.mulf %19, %27 : vector<8x128xf32>
    %c0_16 = arith.constant 0 : index
    %c0_17 = arith.constant 0 : index
    %29 = vector.load %arg7[%c0_16, %c0_17] : memref<8x128xf32, #tpu.memory_space<vmem>>, vector<8x128xf32>
    tpu.vector_store %arg7[%c0_16, %c0_17], %28 {strides = array<i32>} : memref<8x128xf32, #tpu.memory_space<vmem>>, vector<8x128xf32>,
    return
  }
  func.func @transform_0(%arg0: i32) -> (i32, i32) {
    %c0_i32 = arith.constant 0 : i32
    %c0_i32_0 = arith.constant 0 : i32
    return %arg0, %c0_i32 : i32, i32
  }
  func.func @transform_1(%arg0: i32) -> (i32, i32) {
    %c0_i32 = arith.constant 0 : i32
    %c0_i32_0 = arith.constant 0 : i32
    %c0_i32_1 = arith.constant 0 : i32
    return %c0_i32, %c0_i32_0 : i32, i32
  }
  func.func @transform_2(%arg0: i32) -> (i32, i32) {
    %c0_i32 = arith.constant 0 : i32
    %c0_i32_0 = arith.constant 0 : i32
    %c0_i32_1 = arith.constant 0 : i32
    return %c0_i32, %c0_i32_0 : i32, i32
  }
  func.func @transform_3(%arg0: i32) -> (i32, i32) {
    %c0_i32 = arith.constant 0 : i32
    %c0_i32_0 = arith.constant 0 : i32
    %c0_i32_1 = arith.constant 0 : i32
    return %c0_i32, %c0_i32_0 : i32, i32
  }
  func.func @transform_4(%arg0: i32) -> (i32, i32) {
    %c0_i32 = arith.constant 0 : i32
    %c0_i32_0 = arith.constant 0 : i32
    %c0_i32_1 = arith.constant 0 : i32
    return %c0_i32, %c0_i32_0 : i32, i32
  }
  func.func @transform_5(%arg0: i32) -> (i32, i32) {
    %c0_i32 = arith.constant 0 : i32
    %c0_i32_0 = arith.constant 0 : i32
    %c0_i32_1 = arith.constant 0 : i32
    return %c0_i32, %c0_i32_0 : i32, i32
  }
  func.func @transform_6(%arg0: i32) -> (i32, i32) {
    %c0_i32 = arith.constant 0 : i32
    %c0_i32_0 = arith.constant 0 : i32
    return %arg0, %c0_i32 : i32, i32
  }
}

</mosaic_0001>

<llo_original>
// kernel: nplm_forward.1
$region0: #{nplm_forward.1}
  #allocation0 [shape = 'u32[]', space=smem, size = 0x4, offset = 0x4, fixed_abs, tag = 'smem constant byte address 0x4 - core index']
  #allocation1 [shape = 'u32[144,128]{1,0:T(1,128)}', space=vmem, size = 0x12000, scoped, tag = 'internal scratch']
  %s0 = inlined_call_operand.vmem [shape: f32[8,256], index: 0, kind: input, shape index: {}]
  %s1 = inlined_call_operand.hbm [shape: f32[256,128], index: 1, kind: input, shape index: {}]
  %s2 = inlined_call_operand.vmem [shape: f32[1,128], index: 2, kind: input, shape index: {}]
  %s3 = inlined_call_operand.hbm [shape: f32[128,128], index: 3, kind: input, shape index: {}]
  %s4 = inlined_call_operand.vmem [shape: f32[1,128], index: 4, kind: input, shape index: {}]
  %s5 = inlined_call_operand.hbm [shape: f32[256,128], index: 5, kind: input, shape index: {}]
  %s6 = inlined_call_operand.vmem [shape: f32[8,128], index: 6, kind: output, shape index: {}]
  %s7 = sld [smem:[#allocation0]]
  $region46: #{nplm_forward.1} parent=0
    _
  %s9 = ssub.s32 1, %s7
  %s10 = scalar_select 0, %s9, %s7
  $region1: #{nplm_forward.1} parent=0
    #allocation2 [shape = 'u8[131072]{0}', space=vmem, size = 0x20000, scoped, tag = 'input window, operand 1, single buffered']
    #allocation3 [shape = 's32[1]{0}', space=sflag, size = 0x4, scoped, tag = 'scoped memory for nplm_forward.1']
    #allocation4 [shape = 'u8[65536]{0}', space=vmem, size = 0x10000, scoped, tag = 'input window, operand 3, single buffered']
    #allocation5 [shape = 's32[1]{0}', space=sflag, size = 0x4, scoped, tag = 'scoped memory for nplm_forward.1']
    #allocation6 [shape = 'u8[131072]{0}', space=vmem, size = 0x20000, scoped, tag = 'input window, operand 5, single buffered']
    %11 = vsyncpa [#allocation3], 0
    %12 = vsyncpa [#allocation5], 0
    // Predicated region
    $region2: #{nplm_forward.1} parent=1 // pred_check
      _
    $region3: #{nplm_forward.1} parent=1 // pred_check_branch
      %14 = sbr.rel (0) target = $region5
    $region4: #{nplm_forward.1} parent=1 // pred_region
      _
    $region5: #{nplm_forward.1} parent=1 // pred_fallthru
      _
    // Predicated region
    $region6: #{nplm_forward.1} parent=1 // pred_check
      _
    $region7: #{nplm_forward.1} parent=1 // pred_check_branch
      %16 = sbr.rel (0) target = $region9
    $region8: #{nplm_forward.1} parent=1 // pred_region
      %s18 = ssub.s32 4096, 4096
      %19 = vsyncadd [#allocation3], %s18
      %s20 = sshll.u32 [#allocation2], 4
      %s21 = int_to_ptr.vmem [resolvable:$true] %s20
      %26 = dma.hbm_to_vmem [thread:$0]  %s1, 4096, %s21, [#allocation3], 128, 128, 8
    $region9: #{nplm_forward.1} parent=1 // pred_fallthru
      _
    // Predicated region
    $region10: #{nplm_forward.1} parent=1 // pred_check
      _
    $region11: #{nplm_forward.1} parent=1 // pred_check_branch
      %28 = sbr.rel (0) target = $region13
    $region12: #{nplm_forward.1} parent=1 // pred_region
      _
    $region13: #{nplm_forward.1} parent=1 // pred_fallthru
      _
    // Predicated region
    $region14: #{nplm_forward.1} parent=1 // pred_check
      _
    $region15: #{nplm_forward.1} parent=1 // pred_check_branch
      %30 = sbr.rel (0) target = $region17
    $region16: #{nplm_forward.1} parent=1 // pred_region
      %s32 = ssub.s32 2048, 2048
      %33 = vsyncadd [#allocation5], %s32
      %s34 = sshll.u32 [#allocation4], 4
      %s35 = int_to_ptr.vmem [resolvable:$true] %s34
      %40 = dma.hbm_to_vmem [thread:$0]  %s3, 2048, %s35, [#allocation5], 128, 128, 8
    $region17: #{nplm_forward.1} parent=1 // pred_fallthru
      _
    // Predicated region
    $region18: #{nplm_forward.1} parent=1 // pred_check
      _
    $region19: #{nplm_forward.1} parent=1 // pred_check_branch
      %42 = sbr.rel (0) target = $region21
    $region20: #{nplm_forward.1} parent=1 // pred_region
      _
    $region21: #{nplm_forward.1} parent=1 // pred_fallthru
      _
    // Predicated region
    $region22: #{nplm_forward.1} parent=1 // pred_check
      _
    $region23: #{nplm_forward.1} parent=1 // pred_check_branch
      %44 = sbr.rel (0) target = $region25
    $region24: #{nplm_forward.1} parent=1 // pred_region
      %s46 = ssub.s32 4096, 4096
      %47 = vsyncadd [#allocation5], %s46
      %s48 = sshll.u32 [#allocation6], 4
      %s49 = int_to_ptr.vmem [resolvable:$true] %s48
      %54 = dma.hbm_to_vmem [thread:$0]  %s5, 4096, %s49, [#allocation5], 128, 128, 8
    $region25: #{nplm_forward.1} parent=1 // pred_fallthru
      _
    // Predicated region
    $region26: #{nplm_forward.1} parent=1 // pred_check
      _
    $region27: #{nplm_forward.1} parent=1 // pred_check_branch
      %56 = sbr.rel (0) target = $region29
    $region28: #{nplm_forward.1} parent=1 // pred_region
      %57 = dma.done [#allocation3], 4096
    $region29: #{nplm_forward.1} parent=1 // pred_fallthru
      _
    // Predicated region
    $region30: #{nplm_forward.1} parent=1 // pred_check
      _
    $region31: #{nplm_forward.1} parent=1 // pred_check_branch
      %59 = sbr.rel (0) target = $region33
    $region32: #{nplm_forward.1} parent=1 // pred_region
      %60 = dma.done [#allocation5], 2048
    $region33: #{nplm_forward.1} parent=1 // pred_fallthru
      _
    // Predicated region
    $region34: #{nplm_forward.1} parent=1 // pred_check
      _
    $region35: #{nplm_forward.1} parent=1 // pred_check_branch
      %62 = sbr.rel (0) target = $region37
    $region36: #{nplm_forward.1} parent=1 // pred_region
      %63 = dma.done [#allocation5], 4096
    $region37: #{nplm_forward.1} parent=1 // pred_fallthru
      _
    %v64 = vld [vmem:[%s0] sm:$0xff]
    %v65 = vld [vmem:[%s0 + $0x8] sm:$0xff]
    %v66 = vld [vmem:[#allocation2] sm:$0xff]
    %v67 = vld [vmem:[#allocation2 + $0x8] sm:$0xff]
    %v68 = vld [vmem:[#allocation2 + $0x10] sm:$0xff]
    %v69 = vld [vmem:[#allocation2 + $0x18] sm:$0xff]
    %v70 = vld [vmem:[#allocation2 + $0x20] sm:$0xff]
    %v71 = vld [vmem:[#allocation2 + $0x28] sm:$0xff]
    %v72 = vld [vmem:[#allocation2 + $0x30] sm:$0xff]
    %v73 = vld [vmem:[#allocation2 + $0x38] sm:$0xff]
    %v74 = vld [vmem:[#allocation2 + $0x40] sm:$0xff]
    %v75 = vld [vmem:[#allocation2 + $0x48] sm:$0xff]
    %v76 = vld [vmem:[#allocation2 + $0x50] sm:$0xff]
    %v77 = vld [vmem:[#allocation2 + $0x58] sm:$0xff]
    %v78 = vld [vmem:[#allocation2 + $0x60] sm:$0xff]
    %v79 = vld [vmem:[#allocation2 + $0x68] sm:$0xff]
    %v80 = vld [vmem:[#allocation2 + $0x70] sm:$0xff]
    %v81 = vld [vmem:[#allocation2 + $0x78] sm:$0xff]
    %v82 = vld [vmem:[#allocation2 + $0x80] sm:$0xff]
    %v83 = vld [vmem:[#allocation2 + $0x88] sm:$0xff]
    %v84 = vld [vmem:[#allocation2 + $0x90] sm:$0xff]
    %v85 = vld [vmem:[#allocation2 + $0x98] sm:$0xff]
    %v86 = vld [vmem:[#allocation2 + $0xa0] sm:$0xff]
    %v87 = vld [vmem:[#allocation2 + $0xa8] sm:$0xff]
    %v88 = vld [vmem:[#allocation2 + $0xb0] sm:$0xff]
    %v89 = vld [vmem:[#allocation2 + $0xb8] sm:$0xff]
    %v90 = vld [vmem:[#allocation2 + $0xc0] sm:$0xff]
    %v91 = vld [vmem:[#allocation2 + $0xc8] sm:$0xff]
    %v92 = vld [vmem:[#allocation2 + $0xd0] sm:$0xff]
    %v93 = vld [vmem:[#allocation2 + $0xd8] sm:$0xff]
    %v94 = vld [vmem:[#allocation2 + $0xe0] sm:$0xff]
    %v95 = vld [vmem:[#allocation2 + $0xe8] sm:$0xff]
    %v96 = vld [vmem:[#allocation2 + $0xf0] sm:$0xff]
    %v97 = vld [vmem:[#allocation2 + $0xf8] sm:$0xff]
    %v98 = vld [vmem:[%s2] sm:$0x1]
    %v100 = vlaneseq
    %v101 = vshrl.u32 %v100, 7
    %v102 = vsub.s32 0, %v101
    %v103 = vrot.slane %v98, %v102
    %105 = vmatprep.subr.mxu0 0.0
    %106 = vmatpush1.msra.mxu0 %v66
    %107 = vmatprep.subr.mxu0 0.0
    %108 = vmatpush1.msra.mxu0 %v67
    %109 = vmatprep.subr.mxu0 0.0
    %110 = vmatpush1.msra.mxu0 %v68
    %111 = vmatprep.subr.mxu0 0.0
    %112 = vmatpush1.msra.mxu0 %v69
    %113 = vmatprep.subr.mxu0 0.0
    %114 = vmatpush1.msra.mxu0 %v70
    %115 = vmatprep.subr.mxu0 0.0
    %116 = vmatpush1.msra.mxu0 %v71
    %117 = vmatprep.subr.mxu0 0.0
    %118 = vmatpush1.msra.mxu0 %v72
    %119 = vmatprep.subr.mxu0 0.0
    %120 = vmatpush1.msra.mxu0 %v73
    %121 = vmatprep.subr.mxu0 0.0
    %122 = vmatpush1.msra.mxu0 %v74
    %123 = vmatprep.subr.mxu0 0.0
    %124 = vmatpush1.msra.mxu0 %v75
    %125 = vmatprep.subr.mxu0 0.0
    %126 = vmatpush1.msra.mxu0 %v76
    %127 = vmatprep.subr.mxu0 0.0
    %128 = vmatpush1.msra.mxu0 %v77
    %129 = vmatprep.subr.mxu0 0.0
    %130 = vmatpush1.msra.mxu0 %v78
    %131 = vmatprep.subr.mxu0 0.0
    %132 = vmatpush1.msra.mxu0 %v79
    %133 = vmatprep.subr.mxu0 0.0
    %134 = vmatpush1.msra.mxu0 %v80
    %135 = vmatprep.subr.mxu0 0.0
    %136 = vmatpush1.msra.mxu0 %v81
    %137 = vmatprep.subr.mxu0 0.0
    %138 = vmatpush1.msra.mxu0 %v82
    %139 = vmatprep.subr.mxu0 0.0
    %140 = vmatpush1.msra.mxu0 %v83
    %141 = vmatprep.subr.mxu0 0.0
    %142 = vmatpush1.msra.mxu0 %v84
    %143 = vmatprep.subr.mxu0 0.0
    %144 = vmatpush1.msra.mxu0 %v85
    %145 = vmatprep.subr.mxu0 0.0
    %146 = vmatpush1.msra.mxu0 %v86
    %147 = vmatprep.subr.mxu0 0.0
    %148 = vmatpush1.msra.mxu0 %v87
    %149 = vmatprep.subr.mxu0 0.0
    %150 = vmatpush1.msra.mxu0 %v88
    %151 = vmatprep.subr.mxu0 0.0
    %152 = vmatpush1.msra.mxu0 %v89
    %153 = vmatprep.subr.mxu0 0.0
    %154 = vmatpush1.msra.mxu0 %v90
    %155 = vmatprep.subr.mxu0 0.0
    %156 = vmatpush1.msra.mxu0 %v91
    %157 = vmatprep.subr.mxu0 0.0
    %158 = vmatpush1.msra.mxu0 %v92
    %159 = vmatprep.subr.mxu0 0.0
    %160 = vmatpush1.msra.mxu0 %v93
    %161 = vmatprep.subr.mxu0 0.0
    %162 = vmatpush1.msra.mxu0 %v94
    %163 = vmatprep.subr.mxu0 0.0
    %164 = vmatpush1.msra.mxu0 %v95
    %165 = vmatprep.subr.mxu0 0.0
    %166 = vmatpush1.msra.mxu0 %v96
    %167 = vmatprep.subr.mxu0 0.0
    %168 = vmatpush1.msra.mxu0 %v97
    %169 = vmatprep.mubr.f32.mxu0 %v65
    %170 = vmatmul.mubr.f32.gmra.mrb[0].mxu0 %v64
    %v171 = vpop.f32.mrb[0].mxu0
    %v172 = vadd.f32 %v103, %v171
    %v173 = vpop.f32.mrb[0].mxu0
    %174 = vdwg.mxu0
    %v175 = vtanh.pop %v172
    %v176 = vld [vmem:[#allocation4] sm:$0xff]
    %v177 = vld [vmem:[#allocation4 + $0x8] sm:$0xff]
    %v178 = vld [vmem:[#allocation4 + $0x10] sm:$0xff]
    %v179 = vld [vmem:[#allocation4 + $0x18] sm:$0xff]
    %v180 = vld [vmem:[#allocation4 + $0x20] sm:$0xff]
    %v181 = vld [vmem:[#allocation4 + $0x28] sm:$0xff]
    %v182 = vld [vmem:[#allocation4 + $0x30] sm:$0xff]
    %v183 = vld [vmem:[#allocation4 + $0x38] sm:$0xff]
    %v184 = vld [vmem:[#allocation4 + $0x40] sm:$0xff]
    %v185 = vld [vmem:[#allocation4 + $0x48] sm:$0xff]
    %v186 = vld [vmem:[#allocation4 + $0x50] sm:$0xff]
    %v187 = vld [vmem:[#allocation4 + $0x58] sm:$0xff]
    %v188 = vld [vmem:[#allocation4 + $0x60] sm:$0xff]
    %v189 = vld [vmem:[#allocation4 + $0x68] sm:$0xff]
    %v190 = vld [vmem:[#allocation4 + $0x70] sm:$0xff]
    %v191 = vld [vmem:[#allocation4 + $0x78] sm:$0xff]
    %v192 = vld [vmem:[%s4] sm:$0x1]
    %v194 = vlaneseq
    %v195 = vshrl.u32 %v194, 7
    %v196 = vsub.s32 0, %v195
    %v197 = vrot.slane %v192, %v196
    %199 = vmatprep.subr.mxu0 0.0
    %200 = vmatpush1.msra.mxu0 %v176
    %201 = vmatprep.subr.mxu0 0.0
    %202 = vmatpush1.msra.mxu0 %v177
    %203 = vmatprep.subr.mxu0 0.0
    %204 = vmatpush1.msra.mxu0 %v178
    %205 = vmatprep.subr.mxu0 0.0
    %206 = vmatpush1.msra.mxu0 %v179
    %207 = vmatprep.subr.mxu0 0.0
    %208 = vmatpush1.msra.mxu0 %v180
    %209 = vmatprep.subr.mxu0 0.0
    %210 = vmatpush1.msra.mxu0 %v181
    %211 = vmatprep.subr.mxu0 0.0
    %212 = vmatpush1.msra.mxu0 %v182
    %213 = vmatprep.subr.mxu0 0.0
    %214 = vmatpush1.msra.mxu0 %v183
    %215 = vmatprep.subr.mxu0 0.0
    %216 = vmatpush1.msra.mxu0 %v184
    %217 = vmatprep.subr.mxu0 0.0
    %218 = vmatpush1.msra.mxu0 %v185
    %219 = vmatprep.subr.mxu0 0.0
    %220 = vmatpush1.msra.mxu0 %v186
    %221 = vmatprep.subr.mxu0 0.0
    %222 = vmatpush1.msra.mxu0 %v187
    %223 = vmatprep.subr.mxu0 0.0
    %224 = vmatpush1.msra.mxu0 %v188
    %225 = vmatprep.subr.mxu0 0.0
    %226 = vmatpush1.msra.mxu0 %v189
    %227 = vmatprep.subr.mxu0 0.0
    %228 = vmatpush1.msra.mxu0 %v190
    %229 = vmatprep.subr.mxu0 0.0
    %230 = vmatpush1.msra.mxu0 %v191
    %231 = vmatprep.subr.mxu0 0.0
    %232 = vmatpush1.msra.mxu0 0.0
    %233 = vmatprep.subr.mxu0 0.0
    %234 = vmatpush1.msra.mxu0 0.0
    %235 = vmatprep.subr.mxu0 0.0
    %236 = vmatpush1.msra.mxu0 0.0
    %237 = vmatprep.subr.mxu0 0.0
    %238 = vmatpush1.msra.mxu0 0.0
    %239 = vmatprep.subr.mxu0 0.0
    %240 = vmatpush1.msra.mxu0 0.0
    %241 = vmatprep.subr.mxu0 0.0
    %242 = vmatpush1.msra.mxu0 0.0
    %243 = vmatprep.subr.mxu0 0.0
    %244 = vmatpush1.msra.mxu0 0.0
    %245 = vmatprep.subr.mxu0 0.0
    %246 = vmatpush1.msra.mxu0 0.0
    %247 = vmatprep.subr.mxu0 0.0
    %248 = vmatpush1.msra.mxu0 0.0
    %249 = vmatprep.subr.mxu0 0.0
    %250 = vmatpush1.msra.mxu0 0.0
    %251 = vmatprep.subr.mxu0 0.0
    %252 = vmatpush1.msra.mxu0 0.0
    %253 = vmatprep.subr.mxu0 0.0
    %254 = vmatpush1.msra.mxu0 0.0
    %255 = vmatprep.subr.mxu0 0.0
    %256 = vmatpush1.msra.mxu0 0.0
    %257 = vmatprep.subr.mxu0 0.0
    %258 = vmatpush1.msra.mxu0 0.0
    %259 = vmatprep.subr.mxu0 0.0
    %260 = vmatpush1.msra.mxu0 0.0
    %261 = vmatprep.subr.mxu0 0.0
    %262 = vmatpush1.msra.mxu0 0.0
    %263 = vmatprep.mubr.f32.mxu0 0.0
    %264 = vmatmul.mubr.f32.gmra.mrb[0].mxu0 %v175
    %v265 = vpop.f32.mrb[0].mxu0
    %v266 = vadd.f32 %v197, %v265
    %v267 = vpop.f32.mrb[0].mxu0
    %268 = vdwg.mxu0
    %v269 = vld [vmem:[#allocation6] sm:$0xff]
    %v270 = vld [vmem:[#allocation6 + $0x8] sm:$0xff]
    %v271 = vld [vmem:[#allocation6 + $0x10] sm:$0xff]
    %v272 = vld [vmem:[#allocation6 + $0x18] sm:$0xff]
    %v273 = vld [vmem:[#allocation6 + $0x20] sm:$0xff]
    %v274 = vld [vmem:[#allocation6 + $0x28] sm:$0xff]
    %v275 = vld [vmem:[#allocation6 + $0x30] sm:$0xff]
    %v276 = vld [vmem:[#allocation6 + $0x38] sm:$0xff]
    %v277 = vld [vmem:[#allocation6 + $0x40] sm:$0xff]
    %v278 = vld [vmem:[#allocation6 + $0x48] sm:$0xff]
    %v279 = vld [vmem:[#allocation6 + $0x50] sm:$0xff]
    %v280 = vld [vmem:[#allocation6 + $0x58] sm:$0xff]
    %v281 = vld [vmem:[#allocation6 + $0x60] sm:$0xff]
    %v282 = vld [vmem:[#allocation6 + $0x68] sm:$0xff]
    %v283 = vld [vmem:[#allocation6 + $0x70] sm:$0xff]
    %v284 = vld [vmem:[#allocation6 + $0x78] sm:$0xff]
    %v285 = vld [vmem:[#allocation6 + $0x80] sm:$0xff]
    %v286 = vld [vmem:[#allocation6 + $0x88] sm:$0xff]
    %v287 = vld [vmem:[#allocation6 + $0x90] sm:$0xff]
    %v288 = vld [vmem:[#allocation6 + $0x98] sm:$0xff]
    %v289 = vld [vmem:[#allocation6 + $0xa0] sm:$0xff]
    %v290 = vld [vmem:[#allocation6 + $0xa8] sm:$0xff]
    %v291 = vld [vmem:[#allocation6 + $0xb0] sm:$0xff]
    %v292 = vld [vmem:[#allocation6 + $0xb8] sm:$0xff]
    %v293 = vld [vmem:[#allocation6 + $0xc0] sm:$0xff]
    %v294 = vld [vmem:[#allocation6 + $0xc8] sm:$0xff]
    %v295 = vld [vmem:[#allocation6 + $0xd0] sm:$0xff]
    %v296 = vld [vmem:[#allocation6 + $0xd8] sm:$0xff]
    %v297 = vld [vmem:[#allocation6 + $0xe0] sm:$0xff]
    %v298 = vld [vmem:[#allocation6 + $0xe8] sm:$0xff]
    %v299 = vld [vmem:[#allocation6 + $0xf0] sm:$0xff]
    %v300 = vld [vmem:[#allocation6 + $0xf8] sm:$0xff]
    %301 = vmatprep.subr.mxu0 0.0
    %302 = vmatpush1.msra.mxu0 %v269
    %303 = vmatprep.subr.mxu0 0.0
    %304 = vmatpush1.msra.mxu0 %v270
    %305 = vmatprep.subr.mxu0 0.0
    %306 = vmatpush1.msra.mxu0 %v271
    %307 = vmatprep.subr.mxu0 0.0
    %308 = vmatpush1.msra.mxu0 %v272
    %309 = vmatprep.subr.mxu0 0.0
    %310 = vmatpush1.msra.mxu0 %v273
    %311 = vmatprep.subr.mxu0 0.0
    %312 = vmatpush1.msra.mxu0 %v274
    %313 = vmatprep.subr.mxu0 0.0
    %314 = vmatpush1.msra.mxu0 %v275
    %315 = vmatprep.subr.mxu0 0.0
    %316 = vmatpush1.msra.mxu0 %v276
    %317 = vmatprep.subr.mxu0 0.0
    %318 = vmatpush1.msra.mxu0 %v277
    %319 = vmatprep.subr.mxu0 0.0
    %320 = vmatpush1.msra.mxu0 %v278
    %321 = vmatprep.subr.mxu0 0.0
    %322 = vmatpush1.msra.mxu0 %v279
    %323 = vmatprep.subr.mxu0 0.0
    %324 = vmatpush1.msra.mxu0 %v280
    %325 = vmatprep.subr.mxu0 0.0
    %326 = vmatpush1.msra.mxu0 %v281
    %327 = vmatprep.subr.mxu0 0.0
    %328 = vmatpush1.msra.mxu0 %v282
    %329 = vmatprep.subr.mxu0 0.0
    %330 = vmatpush1.msra.mxu0 %v283
    %331 = vmatprep.subr.mxu0 0.0
    %332 = vmatpush1.msra.mxu0 %v284
    %333 = vmatprep.subr.mxu0 0.0
    %334 = vmatpush1.msra.mxu0 %v285
    %335 = vmatprep.subr.mxu0 0.0
    %336 = vmatpush1.msra.mxu0 %v286
    %337 = vmatprep.subr.mxu0 0.0
    %338 = vmatpush1.msra.mxu0 %v287
    %339 = vmatprep.subr.mxu0 0.0
    %340 = vmatpush1.msra.mxu0 %v288
    %341 = vmatprep.subr.mxu0 0.0
    %342 = vmatpush1.msra.mxu0 %v289
    %343 = vmatprep.subr.mxu0 0.0
    %344 = vmatpush1.msra.mxu0 %v290
    %345 = vmatprep.subr.mxu0 0.0
    %346 = vmatpush1.msra.mxu0 %v291
    %347 = vmatprep.subr.mxu0 0.0
    %348 = vmatpush1.msra.mxu0 %v292
    %349 = vmatprep.subr.mxu0 0.0
    %350 = vmatpush1.msra.mxu0 %v293
    %351 = vmatprep.subr.mxu0 0.0
    %352 = vmatpush1.msra.mxu0 %v294
    %353 = vmatprep.subr.mxu0 0.0
    %354 = vmatpush1.msra.mxu0 %v295
    %355 = vmatprep.subr.mxu0 0.0
    %356 = vmatpush1.msra.mxu0 %v296
    %357 = vmatprep.subr.mxu0 0.0
    %358 = vmatpush1.msra.mxu0 %v297
    %359 = vmatprep.subr.mxu0 0.0
    %360 = vmatpush1.msra.mxu0 %v298
    %361 = vmatprep.subr.mxu0 0.0
    %362 = vmatpush1.msra.mxu0 %v299
    %363 = vmatprep.subr.mxu0 0.0
    %364 = vmatpush1.msra.mxu0 %v300
    %365 = vmatprep.mubr.f32.mxu0 %v65
    %366 = vmatmul.mubr.f32.gmra.mrb[0].mxu0 %v64
    %v367 = vpop.f32.mrb[0].mxu0
    %v368 = vadd.f32 0.0, %v367
    %v369 = vpop.f32.mrb[0].mxu0
    %370 = vdwg.mxu0
    %v371 = vadd.f32 %v266, %v368
    %372 = vmax.xlane.f32.xlu0 %v371
    %v373 = vpop.xlane.xlu0 %372
    %v374 = vsub.f32 %v371, %v373
    %v375 = vmul.f32 %v374, 1.442695
    %v376 = vpow.pop %v375
    %377 = vadd.xlane.f32.xlu0 %v376
    %v378 = vpop.xlane.xlu0 %377
    %v379 = vrcp.pop %v378
    %v380 = vmul.f32 %v378, %v379
    %v381 = vsub.f32 2.0, %v380
    %v382 = vmul.f32 %v379, %v381
    %v383 = vmul.f32 %v376, %v382
    %384 = vst [vmem:[%s6] sm:$0xff] %v383
    // Predicated region
    $region38: #{nplm_forward.1} parent=1 // pred_check
      _
    $region39: #{nplm_forward.1} parent=1 // pred_check_branch
      %386 = sbr.rel (0) target = $region41
    $region40: #{nplm_forward.1} parent=1 // pred_region
      _
    $region41: #{nplm_forward.1} parent=1 // pred_fallthru
      _
    // Predicated region
    $region42: #{nplm_forward.1} parent=1 // pred_check
      _
    $region43: #{nplm_forward.1} parent=1 // pred_check_branch
      %388 = sbr.rel (0) target = $region45
    $region44: #{nplm_forward.1} parent=1 // pred_region
      _
    $region45: #{nplm_forward.1} parent=1 // pred_fallthru
      _
    %389 = vsyncpa [#allocation3], 1
    %390 = vsyncpa [#allocation5], 1

</llo_original>
